<compile_context>
chip_gen: v7x
topology: tpu7x:2x2x1
jax: 0.10.0
libtpu: 0.0.40
codegen_flags: <defaults>
</compile_context>

<pallas_src>
import jax
import jax.numpy as jnp
from jax.experimental import pallas as pl
from jax.experimental.pallas import tpu as pltpu


_LANE = 128
_SMALL_TOTAL_BYTES = 512 * 1024        # below this: single-block path
_BLOCK_BYTES_CAP = 2 * 1024 * 1024     # per-block cap, safe on v5e/v6e/v7x
_VMEM_LIMIT_BYTES = 32 * 1024 * 1024   # covers 2 x double-buffered 2 MiB blocks


def _sublane_granule(dtype):
    itemsize = jnp.dtype(dtype).itemsize
    if itemsize >= 4:
        return 8
    if itemsize == 2:
        return 16
    return 32


def _affine_single_block_kernel(s_ref, b_ref, x_ref, o_ref):
    # s/b: (M, 1) columns, x/o: (M, lane). Lane-broadcast multiply-add; the
    # whole problem is one block so this runs in a single grid step.
    o_ref[...] = x_ref[...] * s_ref[...] + b_ref[...]


def _affine_tiled_kernel(w_ref, b_ref, x_ref, o_ref):
    # w/b: (N*C,) vectors in SMEM; x/o: (1, tr, lane) VMEM tiles.
    i = pl.program_id(0)   # flattened (n, c) index
    o_ref[...] = x_ref[...] * w_ref[i] + b_ref[i]


@jax.jit
def grouped_conv1x1(x_nchw, weight, bias):
    """Conv2d(C, C, kernel_size=1, groups=C) forward.

    x_nchw : (N, C, H, W)
    weight : (C, 1, 1, 1)   (grouped: one scalar weight per channel)
    bias   : (C,)
    returns (N, C, H, W)
    """
    N, C, H, W = x_nchw.shape
    dtype = x_nchw.dtype
    itemsize = jnp.dtype(dtype).itemsize
    HW = H * W
    NC = N * C

    # Per-(n, c) scale / bias vectors (length NC, tiny).
    w_vec = jnp.tile(weight.reshape(C).astype(dtype), N)   # (NC,)
    b_vec = jnp.tile(bias.reshape(C).astype(dtype), N)     # (NC,)

    # Flatten spatial; pad once to a lane-dense multiple of 128 so every store
    # in the kernel is an unmasked full-lane store.
    x2 = x_nchw.reshape(NC, HW)
    HWp = ((HW + _LANE - 1) // _LANE) * _LANE
    if HWp != HW:
        x2 = jnp.pad(x2, ((0, 0), (0, HWp - HW)))

    total_bytes = NC * HWp * itemsize
    small = total_bytes <= _SMALL_TOTAL_BYTES
    granule = _sublane_granule(dtype)

    # Lane width: largest multiple of 128 dividing HWp (<= 2048). For the
    # small single-block path, prefer a lane that makes the sublane count a
    # full-vreg multiple (unmasked sublane stores).
    cands = [v for v in (2048, 1024, 512, 256, 128) if HWp % v == 0]
    lane = cands[0]
    if small:
        for v in cands:
            if (NC * (HWp // v)) % granule == 0:
                lane = v
                break
    rows = HWp // lane

    if small:
        # ---- Single-block path: whole tensor in one grid step. ----
        M = NC * rows
        x_small = x2.reshape(M, lane)
        s_col = jnp.repeat(w_vec, rows).reshape(M, 1)
        b_col = jnp.repeat(b_vec, rows).reshape(M, 1)
        out_small = pl.pallas_call(
            _affine_single_block_kernel,
            out_shape=jax.ShapeDtypeStruct((M, lane), dtype),
            cost_estimate=pl.CostEstimate(
                flops=2 * M * lane,
                transcendentals=0,
                bytes_accessed=2 * M * lane * itemsize),
        )(s_col, b_col, x_small)
        out2 = out_small.reshape(NC, HWp)
    else:
        # ---- Tiled path: grid over (N*C, row-tiles), all parallel. ----
        x3 = x2.reshape(NC, rows, lane)
        max_rows = max(granule, (_BLOCK_BYTES_CAP // itemsize) // lane)
        max_rows = (max_rows // granule) * granule
        if rows <= max_rows:
            tr = rows                      # full extent: always legal
        else:
            tr = max_rows                  # granule multiple; ragged last tile
        grid = (NC, pl.cdiv(rows, tr))
        blk = pl.BlockSpec((1, tr, lane), lambda i, j: (i, j, 0))

        out3 = pl.pallas_call(
            _affine_tiled_kernel,
            out_shape=jax.ShapeDtypeStruct((NC, rows, lane), dtype),
            grid=grid,
            in_specs=[
                pl.BlockSpec(memory_space=pltpu.MemorySpace.SMEM),  # w (NC,)
                pl.BlockSpec(memory_space=pltpu.MemorySpace.SMEM),  # b (NC,)
                blk,                                                # x tiles
            ],
            out_specs=blk,
            compiler_params=pltpu.CompilerParams(
                dimension_semantics=("parallel", "parallel"),
                vmem_limit_bytes=_VMEM_LIMIT_BYTES),
            cost_estimate=pl.CostEstimate(
                flops=2 * NC * rows * lane,
                transcendentals=0,
                bytes_accessed=2 * NC * rows * lane * itemsize),
        )(w_vec, b_vec, x3)
        out2 = out3.reshape(NC, HWp)

    if HWp != HW:
        out2 = out2[:, :HW]
    return out2.reshape(N, C, H, W)


if __name__ == "__main__":
    key = jax.random.PRNGKey(0)
    kx, kw, kb = jax.random.split(key, 3)

    # Module spec: Conv2d(in=2, out=2, kernel_size=1, groups=2)
    N, C, H, W = 2, 2, 16, 16
    x = jax.random.normal(kx, (N, C, H, W), dtype=jnp.float32)
    weight = jax.random.normal(kw, (C, 1, 1, 1), dtype=jnp.float32)
    bias = jax.random.normal(kb, (C,), dtype=jnp.float32)

    out = grouped_conv1x1(x, weight, bias)
    jax.block_until_ready(out)

    # Reference: grouped 1x1 conv with groups == C is a per-channel affine.
    ref = x * weight.reshape(1, C, 1, 1) + bias.reshape(1, C, 1, 1)
    assert out.shape == (N, C, H, W)
    assert jnp.allclose(out, ref, atol=1e-6, rtol=1e-6)

    print("KERNEL_OK")
</pallas_src>

<mosaic_0001>
module attributes {stable_mosaic.version = 11 : i64} {
  func.func @_affine_single_block_kernel(%arg0: memref<8x1xf32, #tpu.memory_space<vmem>>, %arg1: memref<8x1xf32, #tpu.memory_space<vmem>>, %arg2: memref<8x128xf32, #tpu.memory_space<vmem>>, %arg3: memref<8x128xf32, #tpu.memory_space<vmem>>) attributes {dimension_semantics = [], scalar_prefetch = 0 : i64, scratch_operands = 0 : i64, tpu.core_type = #tpu.core_type<tc>} {
    %c0 = arith.constant 0 : index
    %c0_0 = arith.constant 0 : index
    %0 = vector.load %arg2[%c0, %c0_0] : memref<8x128xf32, #tpu.memory_space<vmem>>, vector<8x128xf32>
    %c0_1 = arith.constant 0 : index
    %c0_2 = arith.constant 0 : index
    %1 = vector.load %arg0[%c0_1, %c0_2] : memref<8x1xf32, #tpu.memory_space<vmem>>, vector<8x1xf32>
    %2 = vector.broadcast %1 : vector<8x1xf32> to vector<8x128xf32>
    %3 = arith.mulf %0, %2 : vector<8x128xf32>
    %c0_3 = arith.constant 0 : index
    %c0_4 = arith.constant 0 : index
    %4 = vector.load %arg1[%c0_3, %c0_4] : memref<8x1xf32, #tpu.memory_space<vmem>>, vector<8x1xf32>
    %5 = vector.broadcast %4 : vector<8x1xf32> to vector<8x128xf32>
    %6 = arith.addf %3, %5 : vector<8x128xf32>
    %c0_5 = arith.constant 0 : index
    %c0_6 = arith.constant 0 : index
    %7 = vector.load %arg3[%c0_5, %c0_6] : memref<8x128xf32, #tpu.memory_space<vmem>>, vector<8x128xf32>
    tpu.vector_store %arg3[%c0_5, %c0_6], %6 {strides = array<i32>} : memref<8x128xf32, #tpu.memory_space<vmem>>, vector<8x128xf32>,
    return
  }
}

</mosaic_0001>

<llo_original>
// kernel: tile.11
$region0: #{tile.11}
  #allocation0 [shape = 's32[1]{0}', space=sflag, size = 0x4, scoped, tag = 'scoped memory for tile.11']
  %s0 = inlined_call_operand.vmem [shape: f32[2], index: 0, kind: input, shape index: {}]
  %s1 = inlined_call_operand.vmem [shape: f32[2,2], index: 1, kind: output, shape index: {}]
  // Predicated region
  $region2: #{tile.11} parent=0 // pred_check
    _
  $region3: #{tile.11} parent=0 // pred_check_branch
    %3 = sbr.rel (0) target = $region5
  $region4: #{tile.11} parent=0 // pred_region
    _
  $region5: #{tile.11} parent=0 // pred_fallthru
    _
  %v4 = vld [vmem:[%s0] ss:$0 sm:$0xff]
  %5 = vst [vmem:[%s1] sm:$0x3] %v4

// kernel: tile.12
$region0: #{tile.12}
  %s0 = inlined_call_operand.vmem [shape: f32[2,2], index: 0, kind: input, shape index: {}]
  %s1 = inlined_call_operand.vmem [shape: f32[4], index: 1, kind: output, shape index: {}]
  $region1: #{tile.12} parent=0
    #allocation0 [shape = 'u8[4096]{0}', space=vmem, size = 0x1000, scoped, tag = 'scoped mem for output reshape']
    #allocation1 [shape = 'u8[4096]{0}', space=vmem, size = 0x1000, scoped, tag = 'scoped mem for input reshape']
    %s3 = sshllo.u32 0, 2
    %v4 = vld [vmem:[%s0] sm:%s3]
    %5 = vst [vmem:[#allocation1] sm:%s3] %v4
    %v6 = vld [vmem:[#allocation1] sm:$0x1]
    %vm7 = vcmask 15360
    %8 = vst.msk [vmem:[#allocation0] sm:$0x1] %vm7, %v6
    %s9 = scalar_lea.vmem [#allocation1], 1
    %v10 = vld [vmem:[%s9] sm:$0x1]
    %11 = vrot.lane.b32.xlu0 %v10, 2
    %v12 = vpop.permute.xlu0 %11
    %vm13 = vcmask 31760
    %14 = vst.msk [vmem:[#allocation0] sm:$0x1] %vm13, %v12
    %s16 = sshllo.u32 0, 1
    %v18 = vld [vmem:[#allocation0] sm:%s16]
    %s19 = sshllo.u32 0, 1
    %20 = vst [vmem:[%s1] sm:%s19] %v18

// kernel: grouped_conv1x1.1
$region0: #{grouped_conv1x1.1}
  #allocation0 [shape = 'u32[]', space=smem, size = 0x4, offset = 0x4, fixed_abs, tag = 'smem constant byte address 0x4 - core index']
  #allocation1 [shape = 'u32[144,128]{1,0:T(1,128)}', space=vmem, size = 0x12000, scoped, tag = 'internal scratch']
  %s0 = inlined_call_operand.vmem [shape: f32[8,1], index: 0, kind: input, shape index: {}]
  %s1 = inlined_call_operand.vmem [shape: f32[8,1], index: 1, kind: input, shape index: {}]
  %s2 = inlined_call_operand.vmem [shape: f32[8,128], index: 2, kind: input, shape index: {}]
  %s3 = inlined_call_operand.vmem [shape: f32[8,128], index: 3, kind: output, shape index: {}]
  %s4 = sld [smem:[#allocation0]]
  $region22: #{grouped_conv1x1.1} parent=0
    _
  %s6 = ssub.s32 1, %s4
  %s7 = scalar_select 0, %s6, %s4
  // Predicated region
  $region2: #{grouped_conv1x1.1} parent=0 // pred_check
    _
  $region3: #{grouped_conv1x1.1} parent=0 // pred_check_branch
    %9 = sbr.rel (0) target = $region5
  $region4: #{grouped_conv1x1.1} parent=0 // pred_region
    _
  $region5: #{grouped_conv1x1.1} parent=0 // pred_fallthru
    _
  // Predicated region
  $region6: #{grouped_conv1x1.1} parent=0 // pred_check
    _
  $region7: #{grouped_conv1x1.1} parent=0 // pred_check_branch
    %11 = sbr.rel (0) target = $region9
  $region8: #{grouped_conv1x1.1} parent=0 // pred_region
    _
  $region9: #{grouped_conv1x1.1} parent=0 // pred_fallthru
    _
  // Predicated region
  $region10: #{grouped_conv1x1.1} parent=0 // pred_check
    _
  $region11: #{grouped_conv1x1.1} parent=0 // pred_check_branch
    %13 = sbr.rel (0) target = $region13
  $region12: #{grouped_conv1x1.1} parent=0 // pred_region
    _
  $region13: #{grouped_conv1x1.1} parent=0 // pred_fallthru
    _
  %v14 = vld [vmem:[%s2] sm:$0xff]
  %v15 = vld [vmem:[%s0] sm:$0xff]
  %17 = vset.pattern.permute.xlu0 0
  %18 = vperm.xlu0 %17, %v15
  %v19 = vpop.permute.xlu0 %18
  %v21 = vmul.f32 %v14, %v19
  %v22 = vld [vmem:[%s1] sm:$0xff]
  %24 = vset.pattern.permute.xlu0 0
  %25 = vperm.xlu0 %24, %v22
  %v26 = vpop.permute.xlu0 %25
  %v28 = vadd.f32 %v21, %v26
  %29 = vst [vmem:[%s3] sm:$0xff] %v28
  // Predicated region
  $region14: #{grouped_conv1x1.1} parent=0 // pred_check
    _
  $region15: #{grouped_conv1x1.1} parent=0 // pred_check_branch
    %31 = sbr.rel (0) target = $region17
  $region16: #{grouped_conv1x1.1} parent=0 // pred_region
    _
  $region17: #{grouped_conv1x1.1} parent=0 // pred_fallthru
    _
  // Predicated region
  $region18: #{grouped_conv1x1.1} parent=0 // pred_check
    _
  $region19: #{grouped_conv1x1.1} parent=0 // pred_check_branch
    %33 = sbr.rel (0) target = $region21
  $region20: #{grouped_conv1x1.1} parent=0 // pred_region
    _
  $region21: #{grouped_conv1x1.1} parent=0 // pred_fallthru
    _

</llo_original>
